<compile_context>
chip_gen: v6e
topology: v6e:2x2x1
jax: 0.10.0
libtpu: 0.0.40
codegen_flags: <defaults>
</compile_context>

<pallas_src>
import jax
import jax.numpy as jnp
import numpy as np
from jax.experimental import pallas as pl
from jax.experimental.pallas import tpu as pltpu


def _se_excite_and_scale(x, s, w1t_ref, b1_ref, w2t_ref, b2_ref, o_ref):
    """Shared excitation math. x: (Bt, C, L) f32, s: (Bt, C) f32 pooled stats."""
    h = jnp.dot(s, w1t_ref[...], preferred_element_type=jnp.float32) + b1_ref[...]
    h = jnp.maximum(h, 0.0)                                          # (Bt, S)
    g = jnp.dot(h, w2t_ref[...], preferred_element_type=jnp.float32) + b2_ref[...]
    g = jax.nn.sigmoid(g)                                            # (Bt, O)
    o_ref[...] = (g[:, :, None] * x).astype(o_ref.dtype)


def se_block_kernel_mean(x_ref, w1t_ref, b1_ref, w2t_ref, b2_ref, o_ref):
    """lengths=None path: plain mean over L, no mask input or multiply."""
    x = x_ref[...].astype(jnp.float32)                               # (Bt, C, L)
    inv_l = 1.0 / x_ref.shape[-1]
    s = jnp.sum(x, axis=-1) * inv_l                                  # (Bt, C)
    _se_excite_and_scale(x, s, w1t_ref, b1_ref, w2t_ref, b2_ref, o_ref)


def se_block_kernel_masked(x_ref, lim_ref, w1t_ref, b1_ref, w2t_ref, b2_ref, o_ref):
    """Masked path: lim_ref holds lengths*L per batch; prefix mask built in-kernel."""
    x = x_ref[...].astype(jnp.float32)                               # (Bt, C, L)
    bt, _, L = x_ref.shape
    lims = lim_ref[...].astype(jnp.float32)                          # (Bt, 1)
    t = jax.lax.broadcasted_iota(jnp.int32, (bt, L), 1).astype(jnp.float32)
    m = (t < lims).astype(jnp.float32)                               # (Bt, L)
    total = jnp.sum(m, axis=-1, keepdims=True)                       # (Bt, 1)
    s = jnp.sum(x * m[:, None, :], axis=-1) / total                  # (Bt, C)
    _se_excite_and_scale(x, s, w1t_ref, b1_ref, w2t_ref, b2_ref, o_ref)


def _pick_batch_tile(B, per_batch_bytes, target_bytes=2 << 20):
    """Largest divisor of B whose (Bt, C, L) block is ~<= target_bytes."""
    bt = int(max(1, min(B, target_bytes // max(per_batch_bytes, 1))))
    # Prefer >=2 grid steps (lets v7x shard the parallel batch axis across both
    # TensorCores) as long as blocks stay >= ~512 KiB.
    if bt == B and B > 1 and (B // 2) * per_batch_bytes >= (512 << 10):
        bt = B // 2
    while B % bt:
        bt -= 1
    return bt


def se_block(x, w1, b1, w2, b2, lengths=None, *, batch_tile=None):
    """Squeeze-and-excitation forward.

    x:  (B, C, L)          activations (channels-first)
    w1: (S, C), b1: (S,)   conv1 (kernel_size=1) weight / bias
    w2: (O, S), b2: (O,)   conv2 (kernel_size=1) weight / bias, O must equal C
    lengths: optional (B,) relative lengths in (0, 1]
    """
    B, C, L = x.shape
    S = w1.shape[0]
    O = w2.shape[0]
    if O != C:
        raise ValueError(
            f"out_channels ({O}) must equal in_channels ({C}) for the final "
            "'s * x' broadcast (same constraint as the reference usage).")

    # 1x1 convs == dense layers; pre-transpose once in the wrapper so the
    # kernel computes (Bt, C) @ (C, S) and (Bt, S) @ (S, O) directly.
    w1t = jnp.asarray(w1).T.reshape(C, S)
    w2t = jnp.asarray(w2).T.reshape(S, O)
    b1r = jnp.asarray(b1).reshape(1, S)
    b2r = jnp.asarray(b2).reshape(1, O)

    itemsize = jnp.dtype(x.dtype).itemsize
    bt = batch_tile if batch_tile is not None else _pick_batch_tile(B, C * L * itemsize)
    if B % bt:
        raise ValueError(f"batch_tile={bt} must divide B={B}")
    grid = (B // bt,)

    x_spec = pl.BlockSpec((bt, C, L), lambda g: (g, 0, 0))
    out_spec = pl.BlockSpec((bt, C, L), lambda g: (g, 0, 0))
    weight_specs = [
        pl.BlockSpec((C, S), lambda g: (0, 0)),   # conv1 weight (transposed)
        pl.BlockSpec((1, S), lambda g: (0, 0)),   # conv1 bias
        pl.BlockSpec((S, O), lambda g: (0, 0)),   # conv2 weight (transposed)
        pl.BlockSpec((1, O), lambda g: (0, 0)),   # conv2 bias
    ]
    compiler_params = pltpu.CompilerParams(dimension_semantics=("parallel",))

    if lengths is None:
        return pl.pallas_call(
            se_block_kernel_mean,
            out_shape=jax.ShapeDtypeStruct((B, C, L), x.dtype),
            grid_spec=pltpu.PrefetchScalarGridSpec(
                num_scalar_prefetch=0,
                grid=grid,
                in_specs=[x_spec] + weight_specs,
                out_specs=out_spec,
            ),
            compiler_params=compiler_params,
        )(x, w1t, b1r, w2t, b2r)

    # Per-batch valid-frame limit lengths[b]*L (float, matching the reference's
    # `arange(L) < lengths*L` comparison). A tiny (B, 1) input replaces the
    # previously materialized (B, L) mask and its HBM/DMA stream.
    lims = (jnp.asarray(lengths).astype(jnp.float32) * L).reshape(B, 1)
    lim_spec = pl.BlockSpec((bt, 1), lambda g: (g, 0))
    return pl.pallas_call(
        se_block_kernel_masked,
        out_shape=jax.ShapeDtypeStruct((B, C, L), x.dtype),
        grid_spec=pltpu.PrefetchScalarGridSpec(
            num_scalar_prefetch=0,
            grid=grid,
            in_specs=[x_spec, lim_spec] + weight_specs,
            out_specs=out_spec,
        ),
        compiler_params=compiler_params,
    )(x, lims, w1t, b1r, w2t, b2r)


def se_block_ref(x, w1, b1, w2, b2, lengths=None):
    """Pure-JAX reference mirroring the PyTorch forward."""
    B, C, L = x.shape
    xf = x.astype(jnp.float32)
    if lengths is not None:
        mask = (jnp.arange(L)[None, :] < (lengths[:, None] * L)).astype(jnp.float32)
        mask = mask[:, None, :]                                 # (B, 1, L)
        total = mask.sum(axis=2, keepdims=True)
        s = (xf * mask).sum(axis=2, keepdims=True) / total      # (B, C, 1)
    else:
        s = xf.mean(axis=2, keepdims=True)
    h = jnp.maximum(jnp.einsum('sc,bcl->bsl', w1, s) + b1[None, :, None], 0.0)
    g = jax.nn.sigmoid(jnp.einsum('os,bsl->bol', w2, h) + b2[None, :, None])
    return (g * xf).astype(x.dtype)


if __name__ == "__main__":
    B, C, S, L = 4, 64, 16, 128   # SEBlock(in_channels=64, se_channels=16, out_channels=64)
    key = jax.random.PRNGKey(0)
    kx, kw1, kb1, kw2, kb2, kl = jax.random.split(key, 6)

    x = jax.random.normal(kx, (B, C, L), dtype=jnp.float32)
    w1 = jax.random.normal(kw1, (S, C), dtype=jnp.float32) * 0.1
    b1 = jax.random.normal(kb1, (S,), dtype=jnp.float32) * 0.1
    w2 = jax.random.normal(kw2, (C, S), dtype=jnp.float32) * 0.1
    b2 = jax.random.normal(kb2, (C,), dtype=jnp.float32) * 0.1
    lengths = jax.random.uniform(kl, (B,), dtype=jnp.float32, minval=0.3, maxval=1.0)

    # lengths=None path, auto batch tile (whole batch in one block here).
    out = jax.block_until_ready(se_block(x, w1, b1, w2, b2))
    ref = se_block_ref(x, w1, b1, w2, b2)
    np.testing.assert_allclose(np.asarray(out), np.asarray(ref), rtol=1e-5, atol=1e-5)

    # masked path (lengths given), forced 2-batch tile -> 2-step parallel grid.
    out_m = jax.block_until_ready(se_block(x, w1, b1, w2, b2, lengths=lengths, batch_tile=2))
    ref_m = se_block_ref(x, w1, b1, w2, b2, lengths=lengths)
    np.testing.assert_allclose(np.asarray(out_m), np.asarray(ref_m), rtol=1e-5, atol=1e-5)

    # lengths=None path with a multi-step grid to exercise the index maps.
    out2 = jax.block_until_ready(se_block(x, w1, b1, w2, b2, batch_tile=1))
    np.testing.assert_allclose(np.asarray(out2), np.asarray(ref), rtol=1e-5, atol=1e-5)

    print("KERNEL_OK")
</pallas_src>

<mosaic_0001>
module attributes {stable_mosaic.version = 11 : i64} {
  func.func @se_block_kernel_mean(%arg0: i32, %arg1: memref<4x64x128xf32, #tpu.memory_space<vmem>>, %arg2: memref<64x16xf32, #tpu.memory_space<vmem>>, %arg3: memref<1x16xf32, #tpu.memory_space<vmem>>, %arg4: memref<16x64xf32, #tpu.memory_space<vmem>>, %arg5: memref<1x64xf32, #tpu.memory_space<vmem>>, %arg6: memref<4x64x128xf32, #tpu.memory_space<vmem>>) attributes {dimension_semantics = [#tpu.dimension_semantics<parallel>], iteration_bounds = array<i64: 1>, scalar_prefetch = 0 : i64, scratch_operands = 0 : i64, tpu.core_type = #tpu.core_type<tc>, window_params = [{transform_indices = @transform_0, window_bounds = array<i64: 4, 64, 128>}, {pipeline_mode = #tpu.pipeline_mode<synchronous>, transform_indices = @transform_1, window_bounds = array<i64: 64, 16>}, {pipeline_mode = #tpu.pipeline_mode<synchronous>, transform_indices = @transform_2, window_bounds = array<i64: 1, 16>}, {pipeline_mode = #tpu.pipeline_mode<synchronous>, transform_indices = @transform_3, window_bounds = array<i64: 16, 64>}, {pipeline_mode = #tpu.pipeline_mode<synchronous>, transform_indices = @transform_4, window_bounds = array<i64: 1, 64>}, {transform_indices = @transform_5, window_bounds = array<i64: 4, 64, 128>}]} {
    %c0 = arith.constant 0 : index
    %c0_0 = arith.constant 0 : index
    %c0_1 = arith.constant 0 : index
    %0 = vector.load %arg1[%c0, %c0_0, %c0_1] : memref<4x64x128xf32, #tpu.memory_space<vmem>>, vector<4x64x128xf32>
    %cst = arith.constant dense<0.000000e+00> : vector<4x64xf32>
    %1 = vector.multi_reduction <add>, %0, %cst [2] : vector<4x64x128xf32> to vector<4x64xf32>
    %cst_2 = arith.constant 7.812500e-03 : f32
    %2 = vector.broadcast %cst_2 : f32 to vector<4x64xf32>
    %3 = arith.mulf %1, %2 : vector<4x64xf32>
    %c0_3 = arith.constant 0 : index
    %c0_4 = arith.constant 0 : index
    %4 = vector.load %arg2[%c0_3, %c0_4] : memref<64x16xf32, #tpu.memory_space<vmem>>, vector<64x16xf32>
    %cst_5 = arith.constant dense<0.000000e+00> : vector<4x16xf32>
    %5 = tpu.matmul %3, %4, %cst_5 {dimension_numbers = #tpu.dot_dimension_numbers<[1], [0], [0], [1], [0, 0, 1, 1], [], []>} : vector<4x64xf32>, vector<64x16xf32>, vector<4x16xf32> -> vector<4x16xf32>
    %c0_6 = arith.constant 0 : index
    %c0_7 = arith.constant 0 : index
    %6 = vector.load %arg3[%c0_6, %c0_7] : memref<1x16xf32, #tpu.memory_space<vmem>>, vector<1x16xf32>
    %7 = vector.broadcast %6 : vector<1x16xf32> to vector<4x16xf32>
    %8 = arith.addf %5, %7 : vector<4x16xf32>
    %cst_8 = arith.constant 0.000000e+00 : f32
    %9 = vector.broadcast %cst_8 : f32 to vector<4x16xf32>
    %10 = arith.maximumf %8, %9 : vector<4x16xf32>
    %c0_9 = arith.constant 0 : index
    %c0_10 = arith.constant 0 : index
    %11 = vector.load %arg4[%c0_9, %c0_10] : memref<16x64xf32, #tpu.memory_space<vmem>>, vector<16x64xf32>
    %cst_11 = arith.constant dense<0.000000e+00> : vector<4x64xf32>
    %12 = tpu.matmul %10, %11, %cst_11 {dimension_numbers = #tpu.dot_dimension_numbers<[1], [0], [0], [1], [0, 0, 1, 1], [], []>} : vector<4x16xf32>, vector<16x64xf32>, vector<4x64xf32> -> vector<4x64xf32>
    %c0_12 = arith.constant 0 : index
    %c0_13 = arith.constant 0 : index
    %13 = vector.load %arg5[%c0_12, %c0_13] : memref<1x64xf32, #tpu.memory_space<vmem>>, vector<1x64xf32>
    %14 = vector.broadcast %13 : vector<1x64xf32> to vector<4x64xf32>
    %15 = arith.addf %12, %14 : vector<4x64xf32>
    %16 = arith.negf %15 : vector<4x64xf32>
    %17 = math.exp %16 : vector<4x64xf32>
    %cst_14 = arith.constant 1.000000e+00 : f32
    %18 = vector.broadcast %cst_14 : f32 to vector<4x64xf32>
    %19 = arith.addf %18, %17 : vector<4x64xf32>
    %20 = arith.divf %18, %19 : vector<4x64xf32>
    %21 = vector.shape_cast %20 : vector<4x64xf32> to vector<4x64x1xf32>
    %22 = vector.broadcast %21 : vector<4x64x1xf32> to vector<4x64x128xf32>
    %23 = arith.mulf %22, %0 : vector<4x64x128xf32>
    %c0_15 = arith.constant 0 : index
    %c0_16 = arith.constant 0 : index
    %c0_17 = arith.constant 0 : index
    %24 = vector.load %arg6[%c0_15, %c0_16, %c0_17] : memref<4x64x128xf32, #tpu.memory_space<vmem>>, vector<4x64x128xf32>
    tpu.vector_store %arg6[%c0_15, %c0_16, %c0_17], %23 {strides = array<i32>} : memref<4x64x128xf32, #tpu.memory_space<vmem>>, vector<4x64x128xf32>,
    return
  }
  func.func @transform_0(%arg0: i32) -> (i32, i32, i32) {
    %c0_i32 = arith.constant 0 : i32
    %c0_i32_0 = arith.constant 0 : i32
    %c0_i32_1 = arith.constant 0 : i32
    return %arg0, %c0_i32, %c0_i32_0 : i32, i32, i32
  }
  func.func @transform_1(%arg0: i32) -> (i32, i32) {
    %c0_i32 = arith.constant 0 : i32
    %c0_i32_0 = arith.constant 0 : i32
    %c0_i32_1 = arith.constant 0 : i32
    return %c0_i32, %c0_i32_0 : i32, i32
  }
  func.func @transform_2(%arg0: i32) -> (i32, i32) {
    %c0_i32 = arith.constant 0 : i32
    %c0_i32_0 = arith.constant 0 : i32
    %c0_i32_1 = arith.constant 0 : i32
    return %c0_i32, %c0_i32_0 : i32, i32
  }
  func.func @transform_3(%arg0: i32) -> (i32, i32) {
    %c0_i32 = arith.constant 0 : i32
    %c0_i32_0 = arith.constant 0 : i32
    %c0_i32_1 = arith.constant 0 : i32
    return %c0_i32, %c0_i32_0 : i32, i32
  }
  func.func @transform_4(%arg0: i32) -> (i32, i32) {
    %c0_i32 = arith.constant 0 : i32
    %c0_i32_0 = arith.constant 0 : i32
    %c0_i32_1 = arith.constant 0 : i32
    return %c0_i32, %c0_i32_0 : i32, i32
  }
  func.func @transform_5(%arg0: i32) -> (i32, i32, i32) {
    %c0_i32 = arith.constant 0 : i32
    %c0_i32_0 = arith.constant 0 : i32
    %c0_i32_1 = arith.constant 0 : i32
    return %arg0, %c0_i32, %c0_i32_0 : i32, i32, i32
  }
}

</mosaic_0001>

<llo_original>
// kernel: tpu_custom_call.1
$region0: #{tpu_custom_call.1}
  #allocation0 [shape = 'u32[]', space=smem, size = 0x4, offset = 0x4, fixed_abs, tag = 'smem constant byte address 0x4 - core index']
  #allocation1 [shape = 'u32[144,128]{1,0:T(1,128)}', space=vmem, size = 0x12000, scoped, tag = 'internal scratch']
  %s0 = inlined_call_operand.hbm [shape: f32[4,64,128], index: 0, kind: input, shape index: {}]
  %s1 = inlined_call_operand.vmem [shape: f32[64,16], index: 1, kind: input, shape index: {}]
  %s2 = inlined_call_operand.vmem [shape: f32[1,16], index: 2, kind: input, shape index: {}]
  %s3 = inlined_call_operand.vmem [shape: f32[16,64], index: 3, kind: input, shape index: {}]
  %s4 = inlined_call_operand.vmem [shape: f32[1,64], index: 4, kind: input, shape index: {}]
  %s5 = inlined_call_operand.hbm [shape: f32[4,64,128], index: 5, kind: output, shape index: {}]
  %s6 = sld [smem:[#allocation0]]
  $region34: #{tpu_custom_call.1} parent=0
    _
  %s8 = ssub.s32 1, %s6
  %s9 = scalar_select 0, %s8, %s6
  $region1: #{tpu_custom_call.1} parent=0
    #allocation2 [shape = 'u8[131072]{0}', space=vmem, size = 0x20000, scoped, tag = 'input window, operand 0, single buffered']
    #allocation3 [shape = 's32[1]{0}', space=sflag, size = 0x4, scoped, tag = 'scoped memory for tpu_custom_call.1']
    #allocation4 [shape = 's32[1]{0}', space=sflag, size = 0x4, scoped, tag = 'scoped memory for tpu_custom_call.1']
    #allocation5 [shape = 'u8[131072]{0}', space=vmem, size = 0x20000, scoped, tag = 'output window, operand 0, single buffered']
    %10 = vsyncpa [#allocation3], 0
    %11 = vsyncpa [#allocation4], 0
    // Predicated region
    $region2: #{tpu_custom_call.1} parent=1 // pred_check
      _
    $region3: #{tpu_custom_call.1} parent=1 // pred_check_branch
      %13 = sbr.rel (0) target = $region5
    $region4: #{tpu_custom_call.1} parent=1 // pred_region
      %s15 = ssub.s32 4096, 4096
      %16 = vsyncadd [#allocation3], %s15
      %s17 = sshll.u32 [#allocation2], 4
      %s18 = int_to_ptr.vmem [resolvable:$true] %s17
      %23 = dma.hbm_to_vmem [thread:$0]  %s0, 4096, %s18, [#allocation3], 128, 128, 8
    $region5: #{tpu_custom_call.1} parent=1 // pred_fallthru
      _
    // Predicated region
    $region6: #{tpu_custom_call.1} parent=1 // pred_check
      _
    $region7: #{tpu_custom_call.1} parent=1 // pred_check_branch
      %25 = sbr.rel (0) target = $region9
    $region8: #{tpu_custom_call.1} parent=1 // pred_region
      _
    $region9: #{tpu_custom_call.1} parent=1 // pred_fallthru
      _
    // Predicated region
    $region10: #{tpu_custom_call.1} parent=1 // pred_check
      _
    $region11: #{tpu_custom_call.1} parent=1 // pred_check_branch
      %27 = sbr.rel (0) target = $region13
    $region12: #{tpu_custom_call.1} parent=1 // pred_region
      _
    $region13: #{tpu_custom_call.1} parent=1 // pred_fallthru
      _
    // Predicated region
    $region14: #{tpu_custom_call.1} parent=1 // pred_check
      _
    $region15: #{tpu_custom_call.1} parent=1 // pred_check_branch
      %29 = sbr.rel (0) target = $region17
    $region16: #{tpu_custom_call.1} parent=1 // pred_region
      _
    $region17: #{tpu_custom_call.1} parent=1 // pred_fallthru
      _
    // Predicated region
    $region18: #{tpu_custom_call.1} parent=1 // pred_check
      _
    $region19: #{tpu_custom_call.1} parent=1 // pred_check_branch
      %31 = sbr.rel (0) target = $region21
    $region20: #{tpu_custom_call.1} parent=1 // pred_region
      _
    $region21: #{tpu_custom_call.1} parent=1 // pred_fallthru
      _
    // Predicated region
    $region22: #{tpu_custom_call.1} parent=1 // pred_check
      _
    $region23: #{tpu_custom_call.1} parent=1 // pred_check_branch
      %33 = sbr.rel (0) target = $region25
    $region24: #{tpu_custom_call.1} parent=1 // pred_region
      %34 = dma.done [#allocation3], 4096
    $region25: #{tpu_custom_call.1} parent=1 // pred_fallthru
      _
    %v35 = vld [vmem:[#allocation2] sm:$0xff]
    %v36 = vld [vmem:[#allocation2 + $0x8] sm:$0xff]
    %v37 = vld [vmem:[#allocation2 + $0x10] sm:$0xff]
    %v38 = vld [vmem:[#allocation2 + $0x18] sm:$0xff]
    %v39 = vld [vmem:[#allocation2 + $0x20] sm:$0xff]
    %v40 = vld [vmem:[#allocation2 + $0x28] sm:$0xff]
    %v41 = vld [vmem:[#allocation2 + $0x30] sm:$0xff]
    %v42 = vld [vmem:[#allocation2 + $0x38] sm:$0xff]
    %v43 = vld [vmem:[#allocation2 + $0x40] sm:$0xff]
    %v44 = vld [vmem:[#allocation2 + $0x48] sm:$0xff]
    %v45 = vld [vmem:[#allocation2 + $0x50] sm:$0xff]
    %v46 = vld [vmem:[#allocation2 + $0x58] sm:$0xff]
    %v47 = vld [vmem:[#allocation2 + $0x60] sm:$0xff]
    %v48 = vld [vmem:[#allocation2 + $0x68] sm:$0xff]
    %v49 = vld [vmem:[#allocation2 + $0x70] sm:$0xff]
    %v50 = vld [vmem:[#allocation2 + $0x78] sm:$0xff]
    %v51 = vld [vmem:[#allocation2 + $0x80] sm:$0xff]
    %v52 = vld [vmem:[#allocation2 + $0x88] sm:$0xff]
    %v53 = vld [vmem:[#allocation2 + $0x90] sm:$0xff]
    %v54 = vld [vmem:[#allocation2 + $0x98] sm:$0xff]
    %v55 = vld [vmem:[#allocation2 + $0xa0] sm:$0xff]
    %v56 = vld [vmem:[#allocation2 + $0xa8] sm:$0xff]
    %v57 = vld [vmem:[#allocation2 + $0xb0] sm:$0xff]
    %v58 = vld [vmem:[#allocation2 + $0xb8] sm:$0xff]
    %v59 = vld [vmem:[#allocation2 + $0xc0] sm:$0xff]
    %v60 = vld [vmem:[#allocation2 + $0xc8] sm:$0xff]
    %v61 = vld [vmem:[#allocation2 + $0xd0] sm:$0xff]
    %v62 = vld [vmem:[#allocation2 + $0xd8] sm:$0xff]
    %v63 = vld [vmem:[#allocation2 + $0xe0] sm:$0xff]
    %v64 = vld [vmem:[#allocation2 + $0xe8] sm:$0xff]
    %v65 = vld [vmem:[#allocation2 + $0xf0] sm:$0xff]
    %v66 = vld [vmem:[#allocation2 + $0xf8] sm:$0xff]
    %67 = vadd.xlane.f32.xlu0 %v35
    %v68 = vpop.xlane.xlu0 %67
    %69 = vadd.xlane.f32.xlu0 %v36
    %v70 = vpop.xlane.xlu0 %69
    %71 = vadd.xlane.f32.xlu0 %v37
    %v72 = vpop.xlane.xlu0 %71
    %73 = vadd.xlane.f32.xlu0 %v38
    %v74 = vpop.xlane.xlu0 %73
    %75 = vadd.xlane.f32.xlu0 %v39
    %v76 = vpop.xlane.xlu0 %75
    %77 = vadd.xlane.f32.xlu0 %v40
    %v78 = vpop.xlane.xlu0 %77
    %79 = vadd.xlane.f32.xlu0 %v41
    %v80 = vpop.xlane.xlu0 %79
    %81 = vadd.xlane.f32.xlu0 %v42
    %v82 = vpop.xlane.xlu0 %81
    %83 = vadd.xlane.f32.xlu0 %v43
    %v84 = vpop.xlane.xlu0 %83
    %85 = vadd.xlane.f32.xlu0 %v44
    %v86 = vpop.xlane.xlu0 %85
    %87 = vadd.xlane.f32.xlu0 %v45
    %v88 = vpop.xlane.xlu0 %87
    %89 = vadd.xlane.f32.xlu0 %v46
    %v90 = vpop.xlane.xlu0 %89
    %91 = vadd.xlane.f32.xlu0 %v47
    %v92 = vpop.xlane.xlu0 %91
    %93 = vadd.xlane.f32.xlu0 %v48
    %v94 = vpop.xlane.xlu0 %93
    %95 = vadd.xlane.f32.xlu0 %v49
    %v96 = vpop.xlane.xlu0 %95
    %97 = vadd.xlane.f32.xlu0 %v50
    %v98 = vpop.xlane.xlu0 %97
    %99 = vadd.xlane.f32.xlu0 %v51
    %v100 = vpop.xlane.xlu0 %99
    %101 = vadd.xlane.f32.xlu0 %v52
    %v102 = vpop.xlane.xlu0 %101
    %103 = vadd.xlane.f32.xlu0 %v53
    %v104 = vpop.xlane.xlu0 %103
    %105 = vadd.xlane.f32.xlu0 %v54
    %v106 = vpop.xlane.xlu0 %105
    %107 = vadd.xlane.f32.xlu0 %v55
    %v108 = vpop.xlane.xlu0 %107
    %109 = vadd.xlane.f32.xlu0 %v56
    %v110 = vpop.xlane.xlu0 %109
    %111 = vadd.xlane.f32.xlu0 %v57
    %v112 = vpop.xlane.xlu0 %111
    %113 = vadd.xlane.f32.xlu0 %v58
    %v114 = vpop.xlane.xlu0 %113
    %115 = vadd.xlane.f32.xlu0 %v59
    %v116 = vpop.xlane.xlu0 %115
    %117 = vadd.xlane.f32.xlu0 %v60
    %v118 = vpop.xlane.xlu0 %117
    %119 = vadd.xlane.f32.xlu0 %v61
    %v120 = vpop.xlane.xlu0 %119
    %121 = vadd.xlane.f32.xlu0 %v62
    %v122 = vpop.xlane.xlu0 %121
    %123 = vadd.xlane.f32.xlu0 %v63
    %v124 = vpop.xlane.xlu0 %123
    %125 = vadd.xlane.f32.xlu0 %v64
    %v126 = vpop.xlane.xlu0 %125
    %127 = vadd.xlane.f32.xlu0 %v65
    %v128 = vpop.xlane.xlu0 %127
    %129 = vadd.xlane.f32.xlu0 %v66
    %v130 = vpop.xlane.xlu0 %129
    %v131 = vmul.f32 %v68, 0.0078125
    %v132 = vmul.f32 %v70, 0.0078125
    %v133 = vmul.f32 %v72, 0.0078125
    %v134 = vmul.f32 %v74, 0.0078125
    %v135 = vmul.f32 %v76, 0.0078125
    %v136 = vmul.f32 %v78, 0.0078125
    %v137 = vmul.f32 %v80, 0.0078125
    %v138 = vmul.f32 %v82, 0.0078125
    %v139 = vmul.f32 %v84, 0.0078125
    %v140 = vmul.f32 %v86, 0.0078125
    %v141 = vmul.f32 %v88, 0.0078125
    %v142 = vmul.f32 %v90, 0.0078125
    %v143 = vmul.f32 %v92, 0.0078125
    %v144 = vmul.f32 %v94, 0.0078125
    %v145 = vmul.f32 %v96, 0.0078125
    %v146 = vmul.f32 %v98, 0.0078125
    %v147 = vmul.f32 %v100, 0.0078125
    %v148 = vmul.f32 %v102, 0.0078125
    %v149 = vmul.f32 %v104, 0.0078125
    %v150 = vmul.f32 %v106, 0.0078125
    %v151 = vmul.f32 %v108, 0.0078125
    %v152 = vmul.f32 %v110, 0.0078125
    %v153 = vmul.f32 %v112, 0.0078125
    %v154 = vmul.f32 %v114, 0.0078125
    %v155 = vmul.f32 %v116, 0.0078125
    %v156 = vmul.f32 %v118, 0.0078125
    %v157 = vmul.f32 %v120, 0.0078125
    %v158 = vmul.f32 %v122, 0.0078125
    %v159 = vmul.f32 %v124, 0.0078125
    %v160 = vmul.f32 %v126, 0.0078125
    %v161 = vmul.f32 %v128, 0.0078125
    %v162 = vmul.f32 %v130, 0.0078125
    %v163 = vld [vmem:[%s1] sm:$0xff]
    %v164 = vld [vmem:[%s1 + $0x8] sm:$0xff]
    %v165 = vld [vmem:[%s1 + $0x10] sm:$0xff]
    %v166 = vld [vmem:[%s1 + $0x18] sm:$0xff]
    %v167 = vld [vmem:[%s1 + $0x20] sm:$0xff]
    %v168 = vld [vmem:[%s1 + $0x28] sm:$0xff]
    %v169 = vld [vmem:[%s1 + $0x30] sm:$0xff]
    %v170 = vld [vmem:[%s1 + $0x38] sm:$0xff]
    %v171 = vld [vmem:[%s2] sm:$0x1]
    %v173 = vlaneseq
    %v174 = vshrl.u32 %v173, 7
    %v175 = vsub.s32 0, %v174
    %v176 = vrot.slane %v171, %v175
    %v210 = vlaneseq
    %v211 = vand.u32 %v210, 127
    %v212 = vlaneseq
    %v213 = vshrl.u32 %v212, 7
    %v214 = vsub.s32 %v211, %v213
    %v215 = vrot.slane %v131, %v214
    %v216 = vadd.s32 %v211, 4294967288
    %v217 = vlaneseq
    %v218 = vshrl.u32 %v217, 7
    %v219 = vsub.s32 %v216, %v218
    %v220 = vrot.slane %v132, %v219
    %vm221 = vcmask 130112
    %v222 = vsel %vm221, %v220, %v215
    %v223 = vadd.s32 %v211, 4294967280
    %v224 = vlaneseq
    %v225 = vshrl.u32 %v224, 7
    %v226 = vsub.s32 %v223, %v225
    %v227 = vrot.slane %v133, %v226
    %vm228 = vcmask 195712
    %v229 = vsel %vm228, %v227, %v222
    %v230 = vadd.s32 %v211, 4294967272
    %v231 = vlaneseq
    %v232 = vshrl.u32 %v231, 7
    %v233 = vsub.s32 %v230, %v232
    %v234 = vrot.slane %v134, %v233
    %vm235 = vcmask 261312
    %v236 = vsel %vm235, %v234, %v229
    %v237 = vadd.s32 %v211, 4294967264
    %v238 = vlaneseq
    %v239 = vshrl.u32 %v238, 7
    %v240 = vsub.s32 %v237, %v239
    %v241 = vrot.slane %v135, %v240
    %vm242 = vcmask 326912
    %v243 = vsel %vm242, %v241, %v236
    %v244 = vadd.s32 %v211, 4294967256
    %v245 = vlaneseq
    %v246 = vshrl.u32 %v245, 7
    %v247 = vsub.s32 %v244, %v246
    %v248 = vrot.slane %v136, %v247
    %vm249 = vcmask 392512
    %v250 = vsel %vm249, %v248, %v243
    %v251 = vadd.s32 %v211, 4294967248
    %v252 = vlaneseq
    %v253 = vshrl.u32 %v252, 7
    %v254 = vsub.s32 %v251, %v253
    %v255 = vrot.slane %v137, %v254
    %vm256 = vcmask 458112
    %v257 = vsel %vm256, %v255, %v250
    %v258 = vadd.s32 %v211, 4294967240
    %v259 = vlaneseq
    %v260 = vshrl.u32 %v259, 7
    %v261 = vsub.s32 %v258, %v260
    %v262 = vrot.slane %v138, %v261
    %vm263 = vcmask 523712
    %v264 = vsel %vm263, %v262, %v257
    %v265 = vlaneseq
    %v266 = vshrl.u32 %v265, 7
    %v267 = vsub.s32 %v211, %v266
    %v268 = vrot.slane %v139, %v267
    %v269 = vlaneseq
    %v270 = vshrl.u32 %v269, 7
    %v271 = vsub.s32 %v216, %v270
    %v272 = vrot.slane %v140, %v271
    %v273 = vsel %vm221, %v272, %v268
    %v274 = vlaneseq
    %v275 = vshrl.u32 %v274, 7
    %v276 = vsub.s32 %v223, %v275
    %v277 = vrot.slane %v141, %v276
    %v278 = vsel %vm228, %v277, %v273
    %v279 = vlaneseq
    %v280 = vshrl.u32 %v279, 7
    %v281 = vsub.s32 %v230, %v280
    %v282 = vrot.slane %v142, %v281
    %v283 = vsel %vm235, %v282, %v278
    %v284 = vlaneseq
    %v285 = vshrl.u32 %v284, 7
    %v286 = vsub.s32 %v237, %v285
    %v287 = vrot.slane %v143, %v286
    %v288 = vsel %vm242, %v287, %v283
    %v289 = vlaneseq
    %v290 = vshrl.u32 %v289, 7
    %v291 = vsub.s32 %v244, %v290
    %v292 = vrot.slane %v144, %v291
    %v293 = vsel %vm249, %v292, %v288
    %v294 = vlaneseq
    %v295 = vshrl.u32 %v294, 7
    %v296 = vsub.s32 %v251, %v295
    %v297 = vrot.slane %v145, %v296
    %v298 = vsel %vm256, %v297, %v293
    %v299 = vlaneseq
    %v300 = vshrl.u32 %v299, 7
    %v301 = vsub.s32 %v258, %v300
    %v302 = vrot.slane %v146, %v301
    %v303 = vsel %vm263, %v302, %v298
    %v304 = vlaneseq
    %v305 = vshrl.u32 %v304, 7
    %v306 = vsub.s32 %v211, %v305
    %v307 = vrot.slane %v147, %v306
    %v308 = vlaneseq
    %v309 = vshrl.u32 %v308, 7
    %v310 = vsub.s32 %v216, %v309
    %v311 = vrot.slane %v148, %v310
    %v312 = vsel %vm221, %v311, %v307
    %v313 = vlaneseq
    %v314 = vshrl.u32 %v313, 7
    %v315 = vsub.s32 %v223, %v314
    %v316 = vrot.slane %v149, %v315
    %v317 = vsel %vm228, %v316, %v312
    %v318 = vlaneseq
    %v319 = vshrl.u32 %v318, 7
    %v320 = vsub.s32 %v230, %v319
    %v321 = vrot.slane %v150, %v320
    %v322 = vsel %vm235, %v321, %v317
    %v323 = vlaneseq
    %v324 = vshrl.u32 %v323, 7
    %v325 = vsub.s32 %v237, %v324
    %v326 = vrot.slane %v151, %v325
    %v327 = vsel %vm242, %v326, %v322
    %v328 = vlaneseq
    %v329 = vshrl.u32 %v328, 7
    %v330 = vsub.s32 %v244, %v329
    %v331 = vrot.slane %v152, %v330
    %v332 = vsel %vm249, %v331, %v327
    %v333 = vlaneseq
    %v334 = vshrl.u32 %v333, 7
    %v335 = vsub.s32 %v251, %v334
    %v336 = vrot.slane %v153, %v335
    %v337 = vsel %vm256, %v336, %v332
    %v338 = vlaneseq
    %v339 = vshrl.u32 %v338, 7
    %v340 = vsub.s32 %v258, %v339
    %v341 = vrot.slane %v154, %v340
    %v342 = vsel %vm263, %v341, %v337
    %v343 = vlaneseq
    %v344 = vshrl.u32 %v343, 7
    %v345 = vsub.s32 %v211, %v344
    %v346 = vrot.slane %v155, %v345
    %v347 = vlaneseq
    %v348 = vshrl.u32 %v347, 7
    %v349 = vsub.s32 %v216, %v348
    %v350 = vrot.slane %v156, %v349
    %v351 = vsel %vm221, %v350, %v346
    %v352 = vlaneseq
    %v353 = vshrl.u32 %v352, 7
    %v354 = vsub.s32 %v223, %v353
    %v355 = vrot.slane %v157, %v354
    %v356 = vsel %vm228, %v355, %v351
    %v357 = vlaneseq
    %v358 = vshrl.u32 %v357, 7
    %v359 = vsub.s32 %v230, %v358
    %v360 = vrot.slane %v158, %v359
    %v361 = vsel %vm235, %v360, %v356
    %v362 = vlaneseq
    %v363 = vshrl.u32 %v362, 7
    %v364 = vsub.s32 %v237, %v363
    %v365 = vrot.slane %v159, %v364
    %v366 = vsel %vm242, %v365, %v361
    %v367 = vlaneseq
    %v368 = vshrl.u32 %v367, 7
    %v369 = vsub.s32 %v244, %v368
    %v370 = vrot.slane %v160, %v369
    %v371 = vsel %vm249, %v370, %v366
    %v372 = vlaneseq
    %v373 = vshrl.u32 %v372, 7
    %v374 = vsub.s32 %v251, %v373
    %v375 = vrot.slane %v161, %v374
    %v376 = vsel %vm256, %v375, %v371
    %v377 = vlaneseq
    %v378 = vshrl.u32 %v377, 7
    %v379 = vsub.s32 %v258, %v378
    %v380 = vrot.slane %v162, %v379
    %v381 = vsel %vm263, %v380, %v376
    %vm382 = vcmask 1041409
    %v383 = vsel %vm382, %v303, %v264
    %vm384 = vcmask 1042434
    %v385 = vsel %vm384, %v342, %v383
    %vm386 = vcmask 1043459
    %v387 = vsel %vm386, %v381, %v385
    %vm388 = vcmask 523264
    %v389 = vsel %vm388, %v387, 0
    %391 = vmatprep.subr.mxu0 0.0
    %392 = vmatpush1.msra.mxu0 0.0
    %393 = vmatprep.subr.mxu0 0.0
    %394 = vmatpush1.msra.mxu0 0.0
    %395 = vmatprep.subr.mxu0 0.0
    %396 = vmatpush1.msra.mxu0 0.0
    %397 = vmatprep.subr.mxu0 0.0
    %398 = vmatpush1.msra.mxu0 0.0
    %399 = vmatprep.subr.mxu0 0.0
    %400 = vmatpush1.msra.mxu0 0.0
    %401 = vmatprep.subr.mxu0 0.0
    %402 = vmatpush1.msra.mxu0 0.0
    %403 = vmatprep.subr.mxu0 0.0
    %404 = vmatpush1.msra.mxu0 0.0
    %405 = vmatprep.subr.mxu0 0.0
    %406 = vmatpush1.msra.mxu0 0.0
    %407 = vmatprep.subr.mxu0 0.0
    %408 = vmatpush1.msra.mxu0 %v170
    %409 = vmatprep.subr.mxu0 0.0
    %410 = vmatpush1.msra.mxu0 %v169
    %411 = vmatprep.subr.mxu0 0.0
    %412 = vmatpush1.msra.mxu0 %v168
    %413 = vmatprep.subr.mxu0 0.0
    %414 = vmatpush1.msra.mxu0 %v167
    %415 = vmatprep.subr.mxu0 0.0
    %416 = vmatpush1.msra.mxu0 %v166
    %417 = vmatprep.subr.mxu0 0.0
    %418 = vmatpush1.msra.mxu0 %v165
    %419 = vmatprep.subr.mxu0 0.0
    %420 = vmatpush1.msra.mxu0 %v164
    %421 = vmatprep.subr.mxu0 0.0
    %422 = vmatpush1.msra.mxu0 %v163
    %423 = vmatprep.subr.mxu0 0.0
    %424 = vmatpush2.msra.mxu0 0.0
    %425 = vmatprep.subr.mxu0 0.0
    %426 = vmatpush2.msra.mxu0 0.0
    %427 = vmatprep.subr.mxu0 0.0
    %428 = vmatpush2.msra.mxu0 0.0
    %429 = vmatprep.subr.mxu0 0.0
    %430 = vmatpush2.msra.mxu0 0.0
    %431 = vmatprep.subr.mxu0 0.0
    %432 = vmatpush2.msra.mxu0 0.0
    %433 = vmatprep.subr.mxu0 0.0
    %434 = vmatpush2.msra.mxu0 0.0
    %435 = vmatprep.subr.mxu0 0.0
    %436 = vmatpush2.msra.mxu0 0.0
    %437 = vmatprep.subr.mxu0 0.0
    %438 = vmatpush2.msra.mxu0 0.0
    %439 = vmatprep.subr.mxu0 0.0
    %440 = vmatpush2.msra.mxu0 0.0
    %441 = vmatprep.subr.mxu0 0.0
    %442 = vmatpush2.msra.mxu0 0.0
    %443 = vmatprep.subr.mxu0 0.0
    %444 = vmatpush2.msra.mxu0 0.0
    %445 = vmatprep.subr.mxu0 0.0
    %446 = vmatpush2.msra.mxu0 0.0
    %447 = vmatprep.subr.mxu0 0.0
    %448 = vmatpush2.msra.mxu0 0.0
    %449 = vmatprep.subr.mxu0 0.0
    %450 = vmatpush2.msra.mxu0 0.0
    %451 = vmatprep.subr.mxu0 0.0
    %452 = vmatpush2.msra.mxu0 0.0
    %453 = vmatprep.subr.mxu0 0.0
    %454 = vmatpush2.msra.mxu0 0.0
    %455 = vmatprep.mubr.f32.mxu0 0.0
    %456 = vmatmul.mubr.f32.gmra.mxu0 %v389
    %v457 = vpop.f32.mrf.mxu0
    %v458 = vadd.f32 %v176, %v457
    %v459 = vpop.f32.mrf.mxu0
    %460 = vdwg.mxu0
    %v461 = vmax.f32 %v458, 0.0
    %v462 = vld [vmem:[%s3] sm:$0xff]
    %v463 = vld [vmem:[%s3 + $0x8] sm:$0xff]
    %v464 = vld [vmem:[%s4] sm:$0x1]
    %v466 = vlaneseq
    %v467 = vshrl.u32 %v466, 7
    %v468 = vsub.s32 0, %v467
    %v469 = vrot.slane %v464, %v468
    %vm471 = vcmask 130048
    %v473 = vsel %vm471, %v461, 0
    %475 = vmatprep.subr.mxu0 0.0
    %476 = vmatpush1.msra.mxu0 0.0
    %477 = vmatprep.subr.mxu0 0.0
    %478 = vmatpush1.msra.mxu0 0.0
    %479 = vmatprep.subr.mxu0 0.0
    %480 = vmatpush1.msra.mxu0 0.0
    %481 = vmatprep.subr.mxu0 0.0
    %482 = vmatpush1.msra.mxu0 0.0
    %483 = vmatprep.subr.mxu0 0.0
    %484 = vmatpush1.msra.mxu0 0.0
    %485 = vmatprep.subr.mxu0 0.0
    %486 = vmatpush1.msra.mxu0 0.0
    %487 = vmatprep.subr.mxu0 0.0
    %488 = vmatpush1.msra.mxu0 0.0
    %489 = vmatprep.subr.mxu0 0.0
    %490 = vmatpush1.msra.mxu0 0.0
    %491 = vmatprep.subr.mxu0 0.0
    %492 = vmatpush1.msra.mxu0 0.0
    %493 = vmatprep.subr.mxu0 0.0
    %494 = vmatpush1.msra.mxu0 0.0
    %495 = vmatprep.subr.mxu0 0.0
    %496 = vmatpush1.msra.mxu0 0.0
    %497 = vmatprep.subr.mxu0 0.0
    %498 = vmatpush1.msra.mxu0 0.0
    %499 = vmatprep.subr.mxu0 0.0
    %500 = vmatpush1.msra.mxu0 0.0
    %501 = vmatprep.subr.mxu0 0.0
    %502 = vmatpush1.msra.mxu0 0.0
    %503 = vmatprep.subr.mxu0 0.0
    %504 = vmatpush1.msra.mxu0 %v463
    %505 = vmatprep.subr.mxu0 0.0
    %506 = vmatpush1.msra.mxu0 %v462
    %507 = vmatprep.subr.mxu0 0.0
    %508 = vmatpush2.msra.mxu0 0.0
    %509 = vmatprep.subr.mxu0 0.0
    %510 = vmatpush2.msra.mxu0 0.0
    %511 = vmatprep.subr.mxu0 0.0
    %512 = vmatpush2.msra.mxu0 0.0
    %513 = vmatprep.subr.mxu0 0.0
    %514 = vmatpush2.msra.mxu0 0.0
    %515 = vmatprep.subr.mxu0 0.0
    %516 = vmatpush2.msra.mxu0 0.0
    %517 = vmatprep.subr.mxu0 0.0
    %518 = vmatpush2.msra.mxu0 0.0
    %519 = vmatprep.subr.mxu0 0.0
    %520 = vmatpush2.msra.mxu0 0.0
    %521 = vmatprep.subr.mxu0 0.0
    %522 = vmatpush2.msra.mxu0 0.0
    %523 = vmatprep.subr.mxu0 0.0
    %524 = vmatpush2.msra.mxu0 0.0
    %525 = vmatprep.subr.mxu0 0.0
    %526 = vmatpush2.msra.mxu0 0.0
    %527 = vmatprep.subr.mxu0 0.0
    %528 = vmatpush2.msra.mxu0 0.0
    %529 = vmatprep.subr.mxu0 0.0
    %530 = vmatpush2.msra.mxu0 0.0
    %531 = vmatprep.subr.mxu0 0.0
    %532 = vmatpush2.msra.mxu0 0.0
    %533 = vmatprep.subr.mxu0 0.0
    %534 = vmatpush2.msra.mxu0 0.0
    %535 = vmatprep.subr.mxu0 0.0
    %536 = vmatpush2.msra.mxu0 0.0
    %537 = vmatprep.subr.mxu0 0.0
    %538 = vmatpush2.msra.mxu0 0.0
    %539 = vmatprep.mubr.f32.mxu0 0.0
    %540 = vmatmul.mubr.f32.gmra.mxu0 %v473
    %v541 = vpop.f32.mrf.mxu0
    %v542 = vadd.f32 %v469, %v541
    %v543 = vpop.f32.mrf.mxu0
    %544 = vdwg.mxu0
    %v545 = vxor.u32 %v542, 2147483648
    %v546 = vmul.f32 %v545, 1.442695
    %v547 = vpow.pop %v546
    %v548 = vadd.f32 %v547, 1.0
    %v549 = vrcp.pop %v548
    %v550 = vmul.f32 1.0, %v549
    %v551 = vlaneseq
    %v552 = vshrl.u32 %v551, 7
    %v553 = vsub.s32 0, %v552
    %v554 = vrot.slane %v550, %v553
    %556 = vbcast.lane.b32.xlu0 %v554, 256
    %v557 = vpop.permute.xlu0 %556
    %s559 = sor.u32 256, 8
    %560 = vbcast.lane.b32.xlu0 %v554, %s559
    %v561 = vpop.permute.xlu0 %560
    %s563 = sor.u32 256, 16
    %564 = vbcast.lane.b32.xlu0 %v554, %s563
    %v565 = vpop.permute.xlu0 %564
    %s567 = sor.u32 256, 24
    %568 = vbcast.lane.b32.xlu0 %v554, %s567
    %v569 = vpop.permute.xlu0 %568
    %s571 = sor.u32 256, 32
    %572 = vbcast.lane.b32.xlu0 %v554, %s571
    %v573 = vpop.permute.xlu0 %572
    %s575 = sor.u32 256, 40
    %576 = vbcast.lane.b32.xlu0 %v554, %s575
    %v577 = vpop.permute.xlu0 %576
    %s579 = sor.u32 256, 48
    %580 = vbcast.lane.b32.xlu0 %v554, %s579
    %v581 = vpop.permute.xlu0 %580
    %s583 = sor.u32 256, 56
    %584 = vbcast.lane.b32.xlu0 %v554, %s583
    %v585 = vpop.permute.xlu0 %584
    %v586 = vlaneseq
    %v587 = vshrl.u32 %v586, 7
    %v588 = vsub.s32 1, %v587
    %v589 = vrot.slane %v550, %v588
    %591 = vbcast.lane.b32.xlu0 %v589, 256
    %v592 = vpop.permute.xlu0 %591
    %s594 = sor.u32 256, 8
    %595 = vbcast.lane.b32.xlu0 %v589, %s594
    %v596 = vpop.permute.xlu0 %595
    %s598 = sor.u32 256, 16
    %599 = vbcast.lane.b32.xlu0 %v589, %s598
    %v600 = vpop.permute.xlu0 %599
    %s602 = sor.u32 256, 24
    %603 = vbcast.lane.b32.xlu0 %v589, %s602
    %v604 = vpop.permute.xlu0 %603
    %s606 = sor.u32 256, 32
    %607 = vbcast.lane.b32.xlu0 %v589, %s606
    %v608 = vpop.permute.xlu0 %607
    %s610 = sor.u32 256, 40
    %611 = vbcast.lane.b32.xlu0 %v589, %s610
    %v612 = vpop.permute.xlu0 %611
    %s614 = sor.u32 256, 48
    %615 = vbcast.lane.b32.xlu0 %v589, %s614
    %v616 = vpop.permute.xlu0 %615
    %s618 = sor.u32 256, 56
    %619 = vbcast.lane.b32.xlu0 %v589, %s618
    %v620 = vpop.permute.xlu0 %619
    %v621 = vlaneseq
    %v622 = vshrl.u32 %v621, 7
    %v623 = vsub.s32 2, %v622
    %v624 = vrot.slane %v550, %v623
    %626 = vbcast.lane.b32.xlu0 %v624, 256
    %v627 = vpop.permute.xlu0 %626
    %s629 = sor.u32 256, 8
    %630 = vbcast.lane.b32.xlu0 %v624, %s629
    %v631 = vpop.permute.xlu0 %630
    %s633 = sor.u32 256, 16
    %634 = vbcast.lane.b32.xlu0 %v624, %s633
    %v635 = vpop.permute.xlu0 %634
    %s637 = sor.u32 256, 24
    %638 = vbcast.lane.b32.xlu0 %v624, %s637
    %v639 = vpop.permute.xlu0 %638
    %s641 = sor.u32 256, 32
    %642 = vbcast.lane.b32.xlu0 %v624, %s641
    %v643 = vpop.permute.xlu0 %642
    %s645 = sor.u32 256, 40
    %646 = vbcast.lane.b32.xlu0 %v624, %s645
    %v647 = vpop.permute.xlu0 %646
    %s649 = sor.u32 256, 48
    %650 = vbcast.lane.b32.xlu0 %v624, %s649
    %v651 = vpop.permute.xlu0 %650
    %s653 = sor.u32 256, 56
    %654 = vbcast.lane.b32.xlu0 %v624, %s653
    %v655 = vpop.permute.xlu0 %654
    %v656 = vlaneseq
    %v657 = vshrl.u32 %v656, 7
    %v658 = vsub.s32 3, %v657
    %v659 = vrot.slane %v550, %v658
    %661 = vbcast.lane.b32.xlu0 %v659, 256
    %v662 = vpop.permute.xlu0 %661
    %s664 = sor.u32 256, 8
    %665 = vbcast.lane.b32.xlu0 %v659, %s664
    %v666 = vpop.permute.xlu0 %665
    %s668 = sor.u32 256, 16
    %669 = vbcast.lane.b32.xlu0 %v659, %s668
    %v670 = vpop.permute.xlu0 %669
    %s672 = sor.u32 256, 24
    %673 = vbcast.lane.b32.xlu0 %v659, %s672
    %v674 = vpop.permute.xlu0 %673
    %s676 = sor.u32 256, 32
    %677 = vbcast.lane.b32.xlu0 %v659, %s676
    %v678 = vpop.permute.xlu0 %677
    %s680 = sor.u32 256, 40
    %681 = vbcast.lane.b32.xlu0 %v659, %s680
    %v682 = vpop.permute.xlu0 %681
    %s684 = sor.u32 256, 48
    %685 = vbcast.lane.b32.xlu0 %v659, %s684
    %v686 = vpop.permute.xlu0 %685
    %s688 = sor.u32 256, 56
    %689 = vbcast.lane.b32.xlu0 %v659, %s688
    %v690 = vpop.permute.xlu0 %689
    %v691 = vmul.f32 %v557, %v35
    %v692 = vmul.f32 %v561, %v36
    %v693 = vmul.f32 %v565, %v37
    %v694 = vmul.f32 %v569, %v38
    %v695 = vmul.f32 %v573, %v39
    %v696 = vmul.f32 %v577, %v40
    %v697 = vmul.f32 %v581, %v41
    %v698 = vmul.f32 %v585, %v42
    %v699 = vmul.f32 %v592, %v43
    %v700 = vmul.f32 %v596, %v44
    %v701 = vmul.f32 %v600, %v45
    %v702 = vmul.f32 %v604, %v46
    %v703 = vmul.f32 %v608, %v47
    %v704 = vmul.f32 %v612, %v48
    %v705 = vmul.f32 %v616, %v49
    %v706 = vmul.f32 %v620, %v50
    %v707 = vmul.f32 %v627, %v51
    %v708 = vmul.f32 %v631, %v52
    %v709 = vmul.f32 %v635, %v53
    %v710 = vmul.f32 %v639, %v54
    %v711 = vmul.f32 %v643, %v55
    %v712 = vmul.f32 %v647, %v56
    %v713 = vmul.f32 %v651, %v57
    %v714 = vmul.f32 %v655, %v58
    %v715 = vmul.f32 %v662, %v59
    %v716 = vmul.f32 %v666, %v60
    %v717 = vmul.f32 %v670, %v61
    %v718 = vmul.f32 %v674, %v62
    %v719 = vmul.f32 %v678, %v63
    %v720 = vmul.f32 %v682, %v64
    %v721 = vmul.f32 %v686, %v65
    %v722 = vmul.f32 %v690, %v66
    %723 = vst [vmem:[#allocation5] sm:$0xff] %v691
    %724 = vst [vmem:[#allocation5 + $0x8] sm:$0xff] %v692
    %725 = vst [vmem:[#allocation5 + $0x10] sm:$0xff] %v693
    %726 = vst [vmem:[#allocation5 + $0x18] sm:$0xff] %v694
    %727 = vst [vmem:[#allocation5 + $0x20] sm:$0xff] %v695
    %728 = vst [vmem:[#allocation5 + $0x28] sm:$0xff] %v696
    %729 = vst [vmem:[#allocation5 + $0x30] sm:$0xff] %v697
    %730 = vst [vmem:[#allocation5 + $0x38] sm:$0xff] %v698
    %731 = vst [vmem:[#allocation5 + $0x40] sm:$0xff] %v699
    %732 = vst [vmem:[#allocation5 + $0x48] sm:$0xff] %v700
    %733 = vst [vmem:[#allocation5 + $0x50] sm:$0xff] %v701
    %734 = vst [vmem:[#allocation5 + $0x58] sm:$0xff] %v702
    %735 = vst [vmem:[#allocation5 + $0x60] sm:$0xff] %v703
    %736 = vst [vmem:[#allocation5 + $0x68] sm:$0xff] %v704
    %737 = vst [vmem:[#allocation5 + $0x70] sm:$0xff] %v705
    %738 = vst [vmem:[#allocation5 + $0x78] sm:$0xff] %v706
    %739 = vst [vmem:[#allocation5 + $0x80] sm:$0xff] %v707
    %740 = vst [vmem:[#allocation5 + $0x88] sm:$0xff] %v708
    %741 = vst [vmem:[#allocation5 + $0x90] sm:$0xff] %v709
    %742 = vst [vmem:[#allocation5 + $0x98] sm:$0xff] %v710
    %743 = vst [vmem:[#allocation5 + $0xa0] sm:$0xff] %v711
    %744 = vst [vmem:[#allocation5 + $0xa8] sm:$0xff] %v712
    %745 = vst [vmem:[#allocation5 + $0xb0] sm:$0xff] %v713
    %746 = vst [vmem:[#allocation5 + $0xb8] sm:$0xff] %v714
    %747 = vst [vmem:[#allocation5 + $0xc0] sm:$0xff] %v715
    %748 = vst [vmem:[#allocation5 + $0xc8] sm:$0xff] %v716
    %749 = vst [vmem:[#allocation5 + $0xd0] sm:$0xff] %v717
    %750 = vst [vmem:[#allocation5 + $0xd8] sm:$0xff] %v718
    %751 = vst [vmem:[#allocation5 + $0xe0] sm:$0xff] %v719
    %752 = vst [vmem:[#allocation5 + $0xe8] sm:$0xff] %v720
    %753 = vst [vmem:[#allocation5 + $0xf0] sm:$0xff] %v721
    %754 = vst [vmem:[#allocation5 + $0xf8] sm:$0xff] %v722
    // Predicated region
    $region26: #{tpu_custom_call.1} parent=1 // pred_check
      _
    $region27: #{tpu_custom_call.1} parent=1 // pred_check_branch
      %756 = sbr.rel (0) target = $region29
    $region28: #{tpu_custom_call.1} parent=1 // pred_region
      %s758 = ssub.s32 4096, 4096
      %759 = vsyncadd [#allocation4], %s758
      %s760 = sshll.u32 [#allocation5], 4
      %s761 = int_to_ptr.vmem [resolvable:$true] %s760
      %766 = dma.vmem_to_hbm [thread:$0]  %s761, 4096, %s5, [#allocation4], 128, 128, 8
    $region29: #{tpu_custom_call.1} parent=1 // pred_fallthru
      _
    // Predicated region
    $region30: #{tpu_custom_call.1} parent=1 // pred_check
      _
    $region31: #{tpu_custom_call.1} parent=1 // pred_check_branch
      %768 = sbr.rel (0) target = $region33
    $region32: #{tpu_custom_call.1} parent=1 // pred_region
      %769 = dma.done [#allocation4], 4096
    $region33: #{tpu_custom_call.1} parent=1 // pred_fallthru
      _
    %770 = vsyncpa [#allocation3], 1
    %771 = vsyncpa [#allocation4], 1

</llo_original>
